<compile_context>
chip_gen: v6e
topology: v6e:2x2x1
jax: 0.10.0
libtpu: 0.0.40
codegen_flags: <defaults>
</compile_context>

<pallas_src>
import functools

import jax
import jax.numpy as jnp
from jax.experimental import pallas as pl
from jax.experimental.pallas import tpu as pltpu


def _round_up(a, m):
    return (a + m - 1) // m * m


def _logistic_kernel(eta_ref, x_ref, o_ref, *, x0):
    # eta lives in SMEM as a length-1 scalar (the nn.Parameter of size [1]).
    # sigmoid(t) == 0.5 * tanh(0.5 * t) + 0.5  -> single EUP transcendental,
    # no divide, output already exactly in [0, 1] so the torch.clamp is a no-op.
    half_eta = 0.5 * eta_ref[0]
    x = x_ref[...].astype(jnp.float32)
    if x0 == 0.0:
        arg = half_eta * x                      # one VALU mul per vreg
    else:
        arg = half_eta * x - (half_eta * x0)    # scalar eta*x0 folded; mul + sub
    z = 0.5 * jnp.tanh(arg) + 0.5
    o_ref[...] = z.astype(o_ref.dtype)


def logistic_activation(x, eta, x0=0.0, *, tile_rows=2048):
    """Pallas TPU implementation of LogisticActivation.forward.

    x   : any shape, floating dtype (kept end-to-end; f32 math inside kernel)
    eta : shape (1,) float32 parameter
    x0  : python float (non-trainable offset)
    """
    orig_shape = x.shape
    orig_dtype = x.dtype
    total = x.size

    lanes = 128
    # Only pad the flat length to a multiple of 128 (no padding to a multiple
    # of the tile — Pallas handles the partial last block itself).
    padded_total = _round_up(total, lanes)
    x_flat = jnp.ravel(x)
    if padded_total != total:
        x_flat = jnp.pad(x_flat, (0, padded_total - total))
    rows = padded_total // lanes
    x2d = x_flat.reshape(rows, lanes)

    # Tile selection:
    #  - default 2048 rows = 1 MiB/block (f32): 2 arrays x 2 buffers = 4 MiB,
    #    safely inside v5e's 16 MiB / v7x's 32 MiB scoped-VMEM defaults.
    #  - aim for >= ~8 grid steps (megacore sharding on v7x) with a 256-row
    #    floor so medium inputs still get reasonably sized blocks.
    target = max(256, _round_up(pl.cdiv(rows, 8), 8))
    tr = min(tile_rows, target, _round_up(rows, 8))
    grid = (pl.cdiv(rows, tr),)

    out2d = pl.pallas_call(
        functools.partial(_logistic_kernel, x0=float(x0)),
        out_shape=jax.ShapeDtypeStruct((rows, lanes), orig_dtype),
        grid_spec=pltpu.PrefetchScalarGridSpec(
            num_scalar_prefetch=0,
            grid=grid,
            in_specs=[
                pl.BlockSpec(memory_space=pltpu.SMEM),        # eta scalar
                pl.BlockSpec((tr, lanes), lambda i: (i, 0)),  # x tile
            ],
            out_specs=pl.BlockSpec((tr, lanes), lambda i: (i, 0)),
        ),
        compiler_params=pltpu.CompilerParams(
            dimension_semantics=("parallel",)
        ),
    )(eta, x2d)

    if padded_total != total:
        out = out2d.reshape(-1)[:total].reshape(orig_shape)
    else:
        out = out2d.reshape(orig_shape)
    return out


if __name__ == "__main__":
    key = jax.random.PRNGKey(0)
    x = jax.random.normal(key, (2, 4, 16, 16), dtype=jnp.float32)

    # Deterministic parameter init matching nn.Parameter(torch.FloatTensor([eta]))
    # with default eta=1, x0=0.
    eta = jnp.array([1.0], dtype=jnp.float32)
    x0 = 0.0

    out = logistic_activation(x, eta, x0)
    out = jax.block_until_ready(out)

    # Reference check in plain JAX (original exp/clip formulation).
    ref = jnp.clip(1.0 / (1.0 + jnp.exp(-eta[0] * (x - x0))), 0.0, 1.0)
    assert out.shape == x.shape
    assert out.dtype == x.dtype
    assert jnp.allclose(out, ref, atol=3e-6, rtol=1e-5)

    print("KERNEL_OK")
</pallas_src>

<mosaic_0001>
module attributes {stable_mosaic.version = 11 : i64} {
  func.func @_logistic_kernel(%arg0: i32, %arg1: memref<1xf32, #tpu.memory_space<smem>>, %arg2: memref<16x128xf32, #tpu.memory_space<vmem>>, %arg3: memref<16x128xf32, #tpu.memory_space<vmem>>) attributes {dimension_semantics = [#tpu.dimension_semantics<parallel>], iteration_bounds = array<i64: 1>, scalar_prefetch = 0 : i64, scratch_operands = 0 : i64, tpu.core_type = #tpu.core_type<tc>, window_params = [{transform_indices = @transform_0, window_bounds = array<i64: 1>}, {transform_indices = @transform_1, window_bounds = array<i64: 16, 128>}, {transform_indices = @transform_2, window_bounds = array<i64: 16, 128>}]} {
    %c0 = arith.constant 0 : index
    %0 = memref.load %arg1[%c0] : memref<1xf32, #tpu.memory_space<smem>>
    %cst = arith.constant 5.000000e-01 : f32
    %1 = arith.mulf %cst, %0 : f32
    %c0_0 = arith.constant 0 : index
    %c0_1 = arith.constant 0 : index
    %2 = vector.load %arg2[%c0_0, %c0_1] : memref<16x128xf32, #tpu.memory_space<vmem>>, vector<16x128xf32>
    %3 = vector.broadcast %1 : f32 to vector<16x128xf32>
    %4 = arith.mulf %3, %2 : vector<16x128xf32>
    %5 = math.tanh %4 : vector<16x128xf32>
    %cst_2 = arith.constant 5.000000e-01 : f32
    %6 = vector.broadcast %cst_2 : f32 to vector<16x128xf32>
    %7 = arith.mulf %6, %5 : vector<16x128xf32>
    %cst_3 = arith.constant 5.000000e-01 : f32
    %8 = vector.broadcast %cst_3 : f32 to vector<16x128xf32>
    %9 = arith.addf %7, %8 : vector<16x128xf32>
    %c0_4 = arith.constant 0 : index
    %c0_5 = arith.constant 0 : index
    %10 = vector.load %arg3[%c0_4, %c0_5] : memref<16x128xf32, #tpu.memory_space<vmem>>, vector<16x128xf32>
    tpu.vector_store %arg3[%c0_4, %c0_5], %9 {strides = array<i32>} : memref<16x128xf32, #tpu.memory_space<vmem>>, vector<16x128xf32>,
    return
  }
  func.func @transform_0(%arg0: i32) -> i32 {
    %c0_i32 = arith.constant 0 : i32
    %c0_i32_0 = arith.constant 0 : i32
    return %c0_i32 : i32
  }
  func.func @transform_1(%arg0: i32) -> (i32, i32) {
    %c0_i32 = arith.constant 0 : i32
    %c0_i32_0 = arith.constant 0 : i32
    return %arg0, %c0_i32 : i32, i32
  }
  func.func @transform_2(%arg0: i32) -> (i32, i32) {
    %c0_i32 = arith.constant 0 : i32
    %c0_i32_0 = arith.constant 0 : i32
    return %arg0, %c0_i32 : i32, i32
  }
}

</mosaic_0001>

<llo_original>
// kernel: tpu_custom_call.1
$region0: #{tpu_custom_call.1}
  #allocation0 [shape = 'u32[]', space=smem, size = 0x4, offset = 0x4, fixed_abs, tag = 'smem constant byte address 0x4 - core index']
  #allocation1 [shape = 'u32[144,128]{1,0:T(1,128)}', space=vmem, size = 0x12000, scoped, tag = 'internal scratch']
  #allocation2 [shape = 'f32[1]{0:T(128)S(6)}', space=smem, size = 0x200, scoped, tag = 'scoped memory for tpu_custom_call.1']
  %s0 = inlined_call_operand.<no memory space> [shape: f32[1], index: 0, kind: input, shape index: {}]
  %s1 = inlined_call_operand.hbm [shape: f32[16,128], index: 1, kind: input, shape index: {}]
  %s2 = inlined_call_operand.hbm [shape: f32[16,128], index: 2, kind: output, shape index: {}]
  %s3 = sld [smem:[#allocation0]]
  $region22: #{tpu_custom_call.1} parent=0
    _
  %s5 = ssub.s32 1, %s3
  %s6 = scalar_select 0, %s5, %s3
  %7 = sst [smem:[#allocation2]] %s0
  $region1: #{tpu_custom_call.1} parent=0
    #allocation3 [shape = 'u8[8192]{0}', space=vmem, size = 0x2000, scoped, tag = 'input window, operand 1, single buffered']
    #allocation4 [shape = 's32[1]{0}', space=sflag, size = 0x4, scoped, tag = 'scoped memory for tpu_custom_call.1']
    #allocation5 [shape = 's32[1]{0}', space=sflag, size = 0x4, scoped, tag = 'scoped memory for tpu_custom_call.1']
    #allocation6 [shape = 'u8[8192]{0}', space=vmem, size = 0x2000, scoped, tag = 'output window, operand 0, single buffered']
    %8 = vsyncpa [#allocation4], 0
    %9 = vsyncpa [#allocation5], 0
    // Predicated region
    $region2: #{tpu_custom_call.1} parent=1 // pred_check
      _
    $region3: #{tpu_custom_call.1} parent=1 // pred_check_branch
      %11 = sbr.rel (0) target = $region5
    $region4: #{tpu_custom_call.1} parent=1 // pred_region
      _
    $region5: #{tpu_custom_call.1} parent=1 // pred_fallthru
      _
    // Predicated region
    $region6: #{tpu_custom_call.1} parent=1 // pred_check
      _
    $region7: #{tpu_custom_call.1} parent=1 // pred_check_branch
      %13 = sbr.rel (0) target = $region9
    $region8: #{tpu_custom_call.1} parent=1 // pred_region
      %s15 = ssub.s32 256, 256
      %16 = vsyncadd [#allocation4], %s15
      %s17 = sshll.u32 [#allocation3], 4
      %s18 = int_to_ptr.vmem [resolvable:$true] %s17
      %23 = dma.hbm_to_vmem [thread:$0]  %s1, 256, %s18, [#allocation4], 128, 128, 8
    $region9: #{tpu_custom_call.1} parent=1 // pred_fallthru
      _
    // Predicated region
    $region10: #{tpu_custom_call.1} parent=1 // pred_check
      _
    $region11: #{tpu_custom_call.1} parent=1 // pred_check_branch
      %25 = sbr.rel (0) target = $region13
    $region12: #{tpu_custom_call.1} parent=1 // pred_region
      %26 = dma.done [#allocation4], 256
    $region13: #{tpu_custom_call.1} parent=1 // pred_fallthru
      _
    %s27 = sld [smem:[#allocation2]]
    %s28 = smul.f32 %s27, 0.5
    %v29 = vld [vmem:[#allocation3] sm:$0xff]
    %v30 = vld [vmem:[#allocation3 + $0x8] sm:$0xff]
    %v31 = vstv %s28
    %v32 = vmul.f32 %v31, %v29
    %v33 = vmul.f32 %v31, %v30
    %v34 = vtanh.pop %v32
    %v35 = vtanh.pop %v33
    %v36 = vmul.f32 %v34, 0.5
    %v37 = vmul.f32 %v35, 0.5
    %v38 = vadd.f32 %v36, 0.5
    %v39 = vadd.f32 %v37, 0.5
    %40 = vst [vmem:[#allocation6] sm:$0xff] %v38
    %41 = vst [vmem:[#allocation6 + $0x8] sm:$0xff] %v39
    // Predicated region
    $region14: #{tpu_custom_call.1} parent=1 // pred_check
      _
    $region15: #{tpu_custom_call.1} parent=1 // pred_check_branch
      %43 = sbr.rel (0) target = $region17
    $region16: #{tpu_custom_call.1} parent=1 // pred_region
      %s45 = ssub.s32 256, 256
      %46 = vsyncadd [#allocation5], %s45
      %s47 = sshll.u32 [#allocation6], 4
      %s48 = int_to_ptr.vmem [resolvable:$true] %s47
      %53 = dma.vmem_to_hbm [thread:$0]  %s48, 256, %s2, [#allocation5], 128, 128, 8
    $region17: #{tpu_custom_call.1} parent=1 // pred_fallthru
      _
    // Predicated region
    $region18: #{tpu_custom_call.1} parent=1 // pred_check
      _
    $region19: #{tpu_custom_call.1} parent=1 // pred_check_branch
      %55 = sbr.rel (0) target = $region21
    $region20: #{tpu_custom_call.1} parent=1 // pred_region
      %56 = dma.done [#allocation5], 256
    $region21: #{tpu_custom_call.1} parent=1 // pred_fallthru
      _
    %57 = vsyncpa [#allocation4], 1
    %58 = vsyncpa [#allocation5], 1

</llo_original>
